<compile_context>
chip_gen: v6e
topology: v6e:2x2x1
jax: 0.10.0
libtpu: 0.0.40
codegen_flags: <defaults>
</compile_context>

<pallas_src>
import functools
import math

import jax
import jax.numpy as jnp
from jax.experimental import pallas as pl
from jax.experimental.pallas import tpu as pltpu


def _round_up(x, m):
    return (x + m - 1) // m * m


def _pick_tile(dim, multiple, max_tile):
    """Pick a tile size (multiple of `multiple`, <= max_tile) that minimizes
    padding of `dim`, and return (tile, padded_dim)."""
    d = _round_up(dim, multiple)
    if d <= max_tile:
        return d, d
    nb = -(-d // max_tile)                      # ceil-div: number of blocks
    t = _round_up(-(-d // nb), multiple)        # balanced tile size
    padded = _round_up(d, t)
    return t, padded


def _matmul_body(x_ref, w_ref, m_ref, b_ref, o_ref, acc_ref, compute_dtype):
    k = pl.program_id(2)

    @pl.when(k == 0)
    def _init():
        acc_ref[...] = jnp.zeros_like(acc_ref)

    w = w_ref[...]
    if m_ref is not None:
        # 0/1 mask stored bf16; upcast is exact. VPU work hides under the MXU.
        w = w * m_ref[...].astype(w.dtype)

    acc_ref[...] += jnp.dot(
        x_ref[...].astype(compute_dtype),
        w.astype(compute_dtype),
        preferred_element_type=jnp.float32,
    )

    @pl.when(k == pl.num_programs(2) - 1)
    def _finalize():
        o_ref[...] = (acc_ref[...] + b_ref[...]).astype(o_ref.dtype)


def _masked_kernel(x_ref, w_ref, m_ref, b_ref, o_ref, acc_ref, *, compute_dtype):
    _matmul_body(x_ref, w_ref, m_ref, b_ref, o_ref, acc_ref, compute_dtype)


def _plain_kernel(x_ref, w_ref, b_ref, o_ref, acc_ref, *, compute_dtype):
    _matmul_body(x_ref, w_ref, None, b_ref, o_ref, acc_ref, compute_dtype)


def customized_linear(x, weight, mask_t=None, bias=None, *,
                      compute_dtype=jnp.float32, tm=256, tn=512, tk=1024):
    """Pallas forward of CustomizedLinear.

    x:      (B, in_features) float32
    weight: (out_features, in_features)   -- module layout
    mask_t: (out_features, in_features)   -- module layout (already .t()), or None
    bias:   (out_features,) or None
    """
    B, K = x.shape
    N = weight.shape[0]
    has_mask = mask_t is not None

    # Layout plumbing (outside the kernel): W / M stored (K, N) so the kernel
    # contracts on K with no transpose and out_features is lane-dense.
    w_kn = weight.T
    if has_mask:
        m_kn = mask_t.T.astype(jnp.bfloat16)   # 0/1 -> bf16: exact, half the bytes
    if bias is None:
        bias = jnp.zeros((N,), x.dtype)

    # Balanced tiles: minimal padding subject to the (8, 128) layout rule.
    tm, Mp = _pick_tile(B, 8, tm)
    tn, Np = _pick_tile(N, 128, tn)
    tk, Kp = _pick_tile(K, 128, tk)

    x_p = jnp.pad(x, ((0, Mp - B), (0, Kp - K)))
    w_p = jnp.pad(w_kn, ((0, Kp - K), (0, Np - N)))
    b_p = jnp.pad(bias, (0, Np - N)).reshape(1, Np)

    grid = (Mp // tm, Np // tn, Kp // tk)

    in_specs = [
        pl.BlockSpec((tm, tk), lambda i, j, k: (i, k)),   # x
        pl.BlockSpec((tk, tn), lambda i, j, k: (k, j)),   # W (K, N)
    ]
    operands = [x_p, w_p]
    mask_bytes = 0
    if has_mask:
        m_p = jnp.pad(m_kn, ((0, Kp - K), (0, Np - N)))
        in_specs.append(pl.BlockSpec((tk, tn), lambda i, j, k: (k, j)))  # mask bf16
        operands.append(m_p)
        mask_bytes = m_p.size * 2
    in_specs.append(pl.BlockSpec((1, tn), lambda i, j, k: (0, j)))       # bias
    operands.append(b_p)

    # Scoped-VMEM budget: double-buffered I/O tiles + the f32 accumulator.
    tile_bytes = (2 * (tm * tk * 4 + tk * tn * 4
                       + (tk * tn * 2 if has_mask else 0)
                       + tn * 4 + tm * tn * 4)
                  + tm * tn * 4)
    vmem_limit = int(min(max(2 * tile_bytes, 32 * 1024 * 1024),
                         48 * 1024 * 1024))

    kernel = functools.partial(
        _masked_kernel if has_mask else _plain_kernel,
        compute_dtype=compute_dtype)

    out_p = pl.pallas_call(
        kernel,
        out_shape=jax.ShapeDtypeStruct((Mp, Np), x.dtype),
        grid_spec=pltpu.PrefetchScalarGridSpec(
            num_scalar_prefetch=0,
            grid=grid,
            in_specs=in_specs,
            out_specs=pl.BlockSpec((tm, tn), lambda i, j, k: (i, j)),
            scratch_shapes=[pltpu.VMEM((tm, tn), jnp.float32)],
        ),
        compiler_params=pltpu.CompilerParams(
            dimension_semantics=("parallel", "parallel", "arbitrary"),
            vmem_limit_bytes=vmem_limit,
        ),
        cost_estimate=pl.CostEstimate(
            flops=2 * Mp * Np * Kp,
            transcendentals=0,
            bytes_accessed=(x_p.size * 4 + w_p.size * 4 + mask_bytes
                            + b_p.size * 4 + Mp * Np * 4),
        ),
    )(*operands)

    return out_p[:B, :N]


# TODO(synk): custom backward (LinearFunction.backward) not implemented; forward only.


def _make_params(key, in_features, out_features):
    k_w, k_b, k_m = jax.random.split(key, 3)
    stdv = 1.0 / math.sqrt(in_features)
    weight = jax.random.uniform(
        k_w, (out_features, in_features), jnp.float32, -stdv, stdv)
    bias = jax.random.uniform(k_b, (out_features,), jnp.float32, -stdv, stdv)
    # mask given as (in_features, out_features) of 0/1 (module convention),
    # then transposed to (out_features, in_features) like __init__ does.
    mask_in_out = (jax.random.uniform(k_m, (in_features, out_features))
                   > 0.5).astype(jnp.float32)
    return weight, bias, mask_in_out.T


if __name__ == "__main__":
    key = jax.random.PRNGKey(0)
    k_small, k_big, k_x1, k_x2 = jax.random.split(key, 4)

    # --- small case matching the module's typical use ---
    batch, in_f, out_f = 8, 32, 64
    weight, bias, mask_t = _make_params(k_small, in_f, out_f)
    x = jax.random.normal(k_x1, (batch, in_f), jnp.float32)

    out = customized_linear(x, weight, mask_t, bias)
    out = jax.block_until_ready(out)
    ref = x @ (weight * mask_t).T + bias[None, :]
    assert out.shape == (batch, out_f)
    assert jnp.allclose(out, ref, atol=1e-5, rtol=1e-5)

    # --- mask=None / bias=None path of the module ---
    out_nb = customized_linear(x, weight, None, None)
    out_nb = jax.block_until_ready(out_nb)
    assert jnp.allclose(out_nb, x @ weight.T, atol=1e-5, rtol=1e-5)

    # --- multi-tile case (exercises the (M, N, K) grid, balanced-tile padding
    #     and the accumulator init/finalize path) ---
    batch2, in_f2, out_f2 = 24, 1100, 700
    weight2, bias2, mask_t2 = _make_params(k_big, in_f2, out_f2)
    x2 = jax.random.normal(k_x2, (batch2, in_f2), jnp.float32)

    out2 = customized_linear(x2, weight2, mask_t2, bias2)
    out2 = jax.block_until_ready(out2)
    ref2 = x2 @ (weight2 * mask_t2).T + bias2[None, :]
    assert out2.shape == (batch2, out_f2)
    assert jnp.allclose(out2, ref2, atol=5e-3, rtol=5e-3)

    print("KERNEL_OK")
</pallas_src>

<mosaic_0001>
module attributes {stable_mosaic.version = 11 : i64} {
  func.func @_masked_kernel(%arg0: i32, %arg1: i32, %arg2: i32, %arg3: memref<8x128xf32, #tpu.memory_space<vmem>>, %arg4: memref<128x128xf32, #tpu.memory_space<vmem>>, %arg5: memref<128x128xbf16, #tpu.memory_space<vmem>>, %arg6: memref<1x128xf32, #tpu.memory_space<vmem>>, %arg7: memref<8x128xf32, #tpu.memory_space<vmem>>, %arg8: memref<8x128xf32, #tpu.memory_space<vmem>>) attributes {dimension_semantics = [#tpu.dimension_semantics<parallel>, #tpu.dimension_semantics<parallel>, #tpu.dimension_semantics<arbitrary>], iteration_bounds = array<i64: 1, 1, 1>, scalar_prefetch = 0 : i64, scratch_operands = 1 : i64, tpu.core_type = #tpu.core_type<tc>, window_params = [{transform_indices = @transform_0, window_bounds = array<i64: 8, 128>}, {transform_indices = @transform_1, window_bounds = array<i64: 128, 128>}, {transform_indices = @transform_2, window_bounds = array<i64: 128, 128>}, {transform_indices = @transform_3, window_bounds = array<i64: 1, 128>}, {transform_indices = @transform_4, window_bounds = array<i64: 8, 128>}]} {
    %c0_i32 = arith.constant 0 : i32
    %0 = arith.cmpi eq, %arg2, %c0_i32 : i32
    %1 = arith.extui %0 : i1 to i32
    %c0_i32_0 = arith.constant 0 : i32
    %2 = arith.cmpi ne, %1, %c0_i32_0 : i32
    scf.if %2 {
      %cst_12 = arith.constant 0.000000e+00 : f32
      %15 = vector.broadcast %cst_12 : f32 to vector<8x128xf32>
      %c0_13 = arith.constant 0 : index
      %c0_14 = arith.constant 0 : index
      %16 = vector.load %arg8[%c0_13, %c0_14] : memref<8x128xf32, #tpu.memory_space<vmem>>, vector<8x128xf32>
      tpu.vector_store %arg8[%c0_13, %c0_14], %15 {strides = array<i32>} : memref<8x128xf32, #tpu.memory_space<vmem>>, vector<8x128xf32>,
    } else {
    }
    %c0 = arith.constant 0 : index
    %c0_1 = arith.constant 0 : index
    %3 = vector.load %arg4[%c0, %c0_1] : memref<128x128xf32, #tpu.memory_space<vmem>>, vector<128x128xf32>
    %c0_2 = arith.constant 0 : index
    %c0_3 = arith.constant 0 : index
    %4 = vector.load %arg5[%c0_2, %c0_3] : memref<128x128xbf16, #tpu.memory_space<vmem>>, vector<128x128xbf16>
    %5 = arith.extf %4 : vector<128x128xbf16> to vector<128x128xf32>
    %6 = arith.mulf %3, %5 : vector<128x128xf32>
    %c0_4 = arith.constant 0 : index
    %c0_5 = arith.constant 0 : index
    %7 = vector.load %arg8[%c0_4, %c0_5] : memref<8x128xf32, #tpu.memory_space<vmem>>, vector<8x128xf32>
    %c0_6 = arith.constant 0 : index
    %c0_7 = arith.constant 0 : index
    %8 = vector.load %arg3[%c0_6, %c0_7] : memref<8x128xf32, #tpu.memory_space<vmem>>, vector<8x128xf32>
    %cst = arith.constant dense<0.000000e+00> : vector<8x128xf32>
    %9 = tpu.matmul %8, %6, %cst {dimension_numbers = #tpu.dot_dimension_numbers<[1], [0], [0], [1], [0, 0, 1, 1], [], []>} : vector<8x128xf32>, vector<128x128xf32>, vector<8x128xf32> -> vector<8x128xf32>
    %10 = arith.addf %7, %9 : vector<8x128xf32>
    %c0_8 = arith.constant 0 : index
    %c0_9 = arith.constant 0 : index
    %11 = vector.load %arg8[%c0_8, %c0_9] : memref<8x128xf32, #tpu.memory_space<vmem>>, vector<8x128xf32>
    tpu.vector_store %arg8[%c0_8, %c0_9], %10 {strides = array<i32>} : memref<8x128xf32, #tpu.memory_space<vmem>>, vector<8x128xf32>,
    %c0_i32_10 = arith.constant 0 : i32
    %12 = arith.cmpi eq, %arg2, %c0_i32_10 : i32
    %13 = arith.extui %12 : i1 to i32
    %c0_i32_11 = arith.constant 0 : i32
    %14 = arith.cmpi ne, %13, %c0_i32_11 : i32
    scf.if %14 {
      %c0_12 = arith.constant 0 : index
      %c0_13 = arith.constant 0 : index
      %15 = vector.load %arg8[%c0_12, %c0_13] : memref<8x128xf32, #tpu.memory_space<vmem>>, vector<8x128xf32>
      %c0_14 = arith.constant 0 : index
      %c0_15 = arith.constant 0 : index
      %16 = vector.load %arg6[%c0_14, %c0_15] : memref<1x128xf32, #tpu.memory_space<vmem>>, vector<1x128xf32>
      %17 = vector.broadcast %16 : vector<1x128xf32> to vector<8x128xf32>
      %18 = arith.addf %15, %17 : vector<8x128xf32>
      %c0_16 = arith.constant 0 : index
      %c0_17 = arith.constant 0 : index
      %19 = vector.load %arg7[%c0_16, %c0_17] : memref<8x128xf32, #tpu.memory_space<vmem>>, vector<8x128xf32>
      tpu.vector_store %arg7[%c0_16, %c0_17], %18 {strides = array<i32>} : memref<8x128xf32, #tpu.memory_space<vmem>>, vector<8x128xf32>,
    } else {
    }
    return
  }
  func.func @transform_0(%arg0: i32, %arg1: i32, %arg2: i32) -> (i32, i32) {
    %c0_i32 = arith.constant 0 : i32
    return %arg0, %arg2 : i32, i32
  }
  func.func @transform_1(%arg0: i32, %arg1: i32, %arg2: i32) -> (i32, i32) {
    %c0_i32 = arith.constant 0 : i32
    return %arg2, %arg1 : i32, i32
  }
  func.func @transform_2(%arg0: i32, %arg1: i32, %arg2: i32) -> (i32, i32) {
    %c0_i32 = arith.constant 0 : i32
    return %arg2, %arg1 : i32, i32
  }
  func.func @transform_3(%arg0: i32, %arg1: i32, %arg2: i32) -> (i32, i32) {
    %c0_i32 = arith.constant 0 : i32
    %c0_i32_0 = arith.constant 0 : i32
    return %c0_i32, %arg1 : i32, i32
  }
  func.func @transform_4(%arg0: i32, %arg1: i32, %arg2: i32) -> (i32, i32) {
    %c0_i32 = arith.constant 0 : i32
    return %arg0, %arg1 : i32, i32
  }
}

</mosaic_0001>

<llo_original>
// kernel: tpu_custom_call.1
$region0: #{tpu_custom_call.1}
  #allocation0 [shape = 'u32[]', space=smem, size = 0x4, offset = 0x4, fixed_abs, tag = 'smem constant byte address 0x4 - core index']
  #allocation1 [shape = 'u32[144,128]{1,0:T(1,128)}', space=vmem, size = 0x12000, scoped, tag = 'internal scratch']
  #allocation2 [shape = 'f32[8,128]{1,0:T(8,128)}', space=vmem, size = 0x1000, scoped, tag = 'scratch operand']
  %s0 = inlined_call_operand.hbm [shape: f32[8,128], index: 0, kind: input, shape index: {}]
  %s1 = inlined_call_operand.hbm [shape: f32[128,128], index: 1, kind: input, shape index: {}]
  %s2 = inlined_call_operand.hbm [shape: bf16[128,128], index: 2, kind: input, shape index: {}]
  %s3 = inlined_call_operand.vmem [shape: f32[1,128], index: 3, kind: input, shape index: {}]
  %s4 = inlined_call_operand.hbm [shape: f32[8,128], index: 4, kind: output, shape index: {}]
  %s5 = sld [smem:[#allocation0]]
  $region46: #{tpu_custom_call.1} parent=0
    _
  %s7 = ssub.s32 1, %s5
  %s8 = scalar_select 0, %s7, %s5
  $region1: #{tpu_custom_call.1} parent=0
    #allocation3 [shape = 'u8[4096]{0}', space=vmem, size = 0x1000, scoped, tag = 'input window, operand 0, single buffered']
    #allocation4 [shape = 's32[1]{0}', space=sflag, size = 0x4, scoped, tag = 'scoped memory for tpu_custom_call.1']
    #allocation5 [shape = 's32[1]{0}', space=sflag, size = 0x4, scoped, tag = 'scoped memory for tpu_custom_call.1']
    #allocation6 [shape = 'u8[65536]{0}', space=vmem, size = 0x10000, scoped, tag = 'input window, operand 1, single buffered']
    #allocation7 [shape = 's32[1]{0}', space=sflag, size = 0x4, scoped, tag = 'scoped memory for tpu_custom_call.1']
    #allocation8 [shape = 'u8[32768]{0}', space=vmem, size = 0x8000, scoped, tag = 'input window, operand 2, single buffered']
    #allocation9 [shape = 'u8[4096]{0}', space=vmem, size = 0x1000, scoped, tag = 'output window, operand 0, single buffered']
    %9 = vsyncpa [#allocation4], 0
    %10 = vsyncpa [#allocation7], 0
    %11 = vsyncpa [#allocation5], 0
    // Predicated region
    $region2: #{tpu_custom_call.1} parent=1 // pred_check
      _
    $region3: #{tpu_custom_call.1} parent=1 // pred_check_branch
      %13 = sbr.rel (0) target = $region5
    $region4: #{tpu_custom_call.1} parent=1 // pred_region
      %s15 = ssub.s32 128, 128
      %16 = vsyncadd [#allocation4], %s15
      %s18 = sshll.u32 [#allocation3], 4
      %s19 = int_to_ptr.vmem [resolvable:$true] %s18
      %21 = dma.hbm_to_vmem [thread:$0]  %s0, 128, %s19, [#allocation4]
    $region5: #{tpu_custom_call.1} parent=1 // pred_fallthru
      _
    // Predicated region
    $region6: #{tpu_custom_call.1} parent=1 // pred_check
      _
    $region7: #{tpu_custom_call.1} parent=1 // pred_check_branch
      %23 = sbr.rel (0) target = $region9
    $region8: #{tpu_custom_call.1} parent=1 // pred_region
      %s25 = ssub.s32 2048, 2048
      %26 = vsyncadd [#allocation7], %s25
      %s27 = sshll.u32 [#allocation6], 4
      %s28 = int_to_ptr.vmem [resolvable:$true] %s27
      %33 = dma.hbm_to_vmem [thread:$0]  %s1, 2048, %s28, [#allocation7], 128, 128, 8
    $region9: #{tpu_custom_call.1} parent=1 // pred_fallthru
      _
    // Predicated region
    $region10: #{tpu_custom_call.1} parent=1 // pred_check
      _
    $region11: #{tpu_custom_call.1} parent=1 // pred_check_branch
      %35 = sbr.rel (0) target = $region13
    $region12: #{tpu_custom_call.1} parent=1 // pred_region
      %s37 = ssub.s32 1024, 1024
      %38 = vsyncadd [#allocation7], %s37
      %s39 = sshll.u32 [#allocation8], 4
      %s40 = int_to_ptr.vmem [resolvable:$true] %s39
      %45 = dma.hbm_to_vmem [thread:$0]  %s2, 1024, %s40, [#allocation7], 64, 64, 4
    $region13: #{tpu_custom_call.1} parent=1 // pred_fallthru
      _
    // Predicated region
    $region14: #{tpu_custom_call.1} parent=1 // pred_check
      _
    $region15: #{tpu_custom_call.1} parent=1 // pred_check_branch
      %47 = sbr.rel (0) target = $region17
    $region16: #{tpu_custom_call.1} parent=1 // pred_region
      _
    $region17: #{tpu_custom_call.1} parent=1 // pred_fallthru
      _
    // Predicated region
    $region18: #{tpu_custom_call.1} parent=1 // pred_check
      _
    $region19: #{tpu_custom_call.1} parent=1 // pred_check_branch
      %49 = sbr.rel (0) target = $region21
    $region20: #{tpu_custom_call.1} parent=1 // pred_region
      %50 = dma.done [#allocation4], 128
    $region21: #{tpu_custom_call.1} parent=1 // pred_fallthru
      _
    // Predicated region
    $region22: #{tpu_custom_call.1} parent=1 // pred_check
      _
    $region23: #{tpu_custom_call.1} parent=1 // pred_check_branch
      %52 = sbr.rel (0) target = $region25
    $region24: #{tpu_custom_call.1} parent=1 // pred_region
      %53 = dma.done [#allocation7], 2048
    $region25: #{tpu_custom_call.1} parent=1 // pred_fallthru
      _
    // Predicated region
    $region26: #{tpu_custom_call.1} parent=1 // pred_check
      _
    $region27: #{tpu_custom_call.1} parent=1 // pred_check_branch
      %55 = sbr.rel (0) target = $region29
    $region28: #{tpu_custom_call.1} parent=1 // pred_region
      %56 = dma.done [#allocation7], 1024
    $region29: #{tpu_custom_call.1} parent=1 // pred_fallthru
      _
    %p57 = scmp.eq.s32.totalorder 0, 0
    // Predicated region
    $region30: #{tpu_custom_call.1} parent=1 // pred_check
      %p58 = pneg %p57
    $region31: #{tpu_custom_call.1} parent=1 // pred_check_branch
      %60 = sbr.rel (%p58) target = $region33
    $region32: #{tpu_custom_call.1} parent=1 // pred_region
      %61 = vst [vmem:[#allocation2] sm:$0xff] 0.0
    $region33: #{tpu_custom_call.1} parent=1 // pred_fallthru
      _
    %v62 = vld [vmem:[#allocation6] sm:$0xff]
    %v63 = vld [vmem:[#allocation6 + $0x8] sm:$0xff]
    %v64 = vld [vmem:[#allocation6 + $0x10] sm:$0xff]
    %v65 = vld [vmem:[#allocation6 + $0x18] sm:$0xff]
    %v66 = vld [vmem:[#allocation6 + $0x20] sm:$0xff]
    %v67 = vld [vmem:[#allocation6 + $0x28] sm:$0xff]
    %v68 = vld [vmem:[#allocation6 + $0x30] sm:$0xff]
    %v69 = vld [vmem:[#allocation6 + $0x38] sm:$0xff]
    %v70 = vld [vmem:[#allocation6 + $0x40] sm:$0xff]
    %v71 = vld [vmem:[#allocation6 + $0x48] sm:$0xff]
    %v72 = vld [vmem:[#allocation6 + $0x50] sm:$0xff]
    %v73 = vld [vmem:[#allocation6 + $0x58] sm:$0xff]
    %v74 = vld [vmem:[#allocation6 + $0x60] sm:$0xff]
    %v75 = vld [vmem:[#allocation6 + $0x68] sm:$0xff]
    %v76 = vld [vmem:[#allocation6 + $0x70] sm:$0xff]
    %v77 = vld [vmem:[#allocation6 + $0x78] sm:$0xff]
    %v78 = vld [vmem:[#allocation8] sm:$0xf]
    %v79 = vld [vmem:[#allocation8 + $0x4] sm:$0xf]
    %v80 = vld [vmem:[#allocation8 + $0x8] sm:$0xf]
    %v81 = vld [vmem:[#allocation8 + $0xc] sm:$0xf]
    %v82 = vld [vmem:[#allocation8 + $0x10] sm:$0xf]
    %v83 = vld [vmem:[#allocation8 + $0x14] sm:$0xf]
    %v84 = vld [vmem:[#allocation8 + $0x18] sm:$0xf]
    %v85 = vld [vmem:[#allocation8 + $0x1c] sm:$0xf]
    %v86 = vld [vmem:[#allocation8 + $0x20] sm:$0xf]
    %v87 = vld [vmem:[#allocation8 + $0x24] sm:$0xf]
    %v88 = vld [vmem:[#allocation8 + $0x28] sm:$0xf]
    %v89 = vld [vmem:[#allocation8 + $0x2c] sm:$0xf]
    %v90 = vld [vmem:[#allocation8 + $0x30] sm:$0xf]
    %v91 = vld [vmem:[#allocation8 + $0x34] sm:$0xf]
    %v92 = vld [vmem:[#allocation8 + $0x38] sm:$0xf]
    %v93 = vld [vmem:[#allocation8 + $0x3c] sm:$0xf]
    %v94 = vunpack.c.l.bf16 %v78
    %v95 = vunpack.c.l.bf16 %v79
    %v96 = vunpack.c.l.bf16 %v80
    %v97 = vunpack.c.l.bf16 %v81
    %v98 = vunpack.c.l.bf16 %v82
    %v99 = vunpack.c.l.bf16 %v83
    %v100 = vunpack.c.l.bf16 %v84
    %v101 = vunpack.c.l.bf16 %v85
    %v102 = vunpack.c.l.bf16 %v86
    %v103 = vunpack.c.l.bf16 %v87
    %v104 = vunpack.c.l.bf16 %v88
    %v105 = vunpack.c.l.bf16 %v89
    %v106 = vunpack.c.l.bf16 %v90
    %v107 = vunpack.c.l.bf16 %v91
    %v108 = vunpack.c.l.bf16 %v92
    %v109 = vunpack.c.l.bf16 %v93
    %v110 = vmul.f32 %v62, %v94
    %v111 = vmul.f32 %v63, %v95
    %v112 = vmul.f32 %v64, %v96
    %v113 = vmul.f32 %v65, %v97
    %v114 = vmul.f32 %v66, %v98
    %v115 = vmul.f32 %v67, %v99
    %v116 = vmul.f32 %v68, %v100
    %v117 = vmul.f32 %v69, %v101
    %v118 = vmul.f32 %v70, %v102
    %v119 = vmul.f32 %v71, %v103
    %v120 = vmul.f32 %v72, %v104
    %v121 = vmul.f32 %v73, %v105
    %v122 = vmul.f32 %v74, %v106
    %v123 = vmul.f32 %v75, %v107
    %v124 = vmul.f32 %v76, %v108
    %v125 = vmul.f32 %v77, %v109
    %v126 = vld [vmem:[#allocation2] sm:$0xff]
    %v127 = vld [vmem:[#allocation3] sm:$0xff]
    %128 = vmatprep.subr.mxu0 0.0
    %129 = vmatpush1.msra.mxu0 %v125
    %130 = vmatprep.subr.mxu0 0.0
    %131 = vmatpush1.msra.mxu0 %v124
    %132 = vmatprep.subr.mxu0 0.0
    %133 = vmatpush1.msra.mxu0 %v123
    %134 = vmatprep.subr.mxu0 0.0
    %135 = vmatpush1.msra.mxu0 %v122
    %136 = vmatprep.subr.mxu0 0.0
    %137 = vmatpush1.msra.mxu0 %v121
    %138 = vmatprep.subr.mxu0 0.0
    %139 = vmatpush1.msra.mxu0 %v120
    %140 = vmatprep.subr.mxu0 0.0
    %141 = vmatpush1.msra.mxu0 %v119
    %142 = vmatprep.subr.mxu0 0.0
    %143 = vmatpush1.msra.mxu0 %v118
    %144 = vmatprep.subr.mxu0 0.0
    %145 = vmatpush1.msra.mxu0 %v117
    %146 = vmatprep.subr.mxu0 0.0
    %147 = vmatpush1.msra.mxu0 %v116
    %148 = vmatprep.subr.mxu0 0.0
    %149 = vmatpush1.msra.mxu0 %v115
    %150 = vmatprep.subr.mxu0 0.0
    %151 = vmatpush1.msra.mxu0 %v114
    %152 = vmatprep.subr.mxu0 0.0
    %153 = vmatpush1.msra.mxu0 %v113
    %154 = vmatprep.subr.mxu0 0.0
    %155 = vmatpush1.msra.mxu0 %v112
    %156 = vmatprep.subr.mxu0 0.0
    %157 = vmatpush1.msra.mxu0 %v111
    %158 = vmatprep.subr.mxu0 0.0
    %159 = vmatpush1.msra.mxu0 %v110
    %160 = vmatprep.subr.mxu0 0.0
    %161 = vmatpush2.msra.mxu0 0.0
    %162 = vmatprep.subr.mxu0 0.0
    %163 = vmatpush2.msra.mxu0 0.0
    %164 = vmatprep.subr.mxu0 0.0
    %165 = vmatpush2.msra.mxu0 0.0
    %166 = vmatprep.subr.mxu0 0.0
    %167 = vmatpush2.msra.mxu0 0.0
    %168 = vmatprep.subr.mxu0 0.0
    %169 = vmatpush2.msra.mxu0 0.0
    %170 = vmatprep.subr.mxu0 0.0
    %171 = vmatpush2.msra.mxu0 0.0
    %172 = vmatprep.subr.mxu0 0.0
    %173 = vmatpush2.msra.mxu0 0.0
    %174 = vmatprep.subr.mxu0 0.0
    %175 = vmatpush2.msra.mxu0 0.0
    %176 = vmatprep.subr.mxu0 0.0
    %177 = vmatpush2.msra.mxu0 0.0
    %178 = vmatprep.subr.mxu0 0.0
    %179 = vmatpush2.msra.mxu0 0.0
    %180 = vmatprep.subr.mxu0 0.0
    %181 = vmatpush2.msra.mxu0 0.0
    %182 = vmatprep.subr.mxu0 0.0
    %183 = vmatpush2.msra.mxu0 0.0
    %184 = vmatprep.subr.mxu0 0.0
    %185 = vmatpush2.msra.mxu0 0.0
    %186 = vmatprep.subr.mxu0 0.0
    %187 = vmatpush2.msra.mxu0 0.0
    %188 = vmatprep.subr.mxu0 0.0
    %189 = vmatpush2.msra.mxu0 0.0
    %190 = vmatprep.subr.mxu0 0.0
    %191 = vmatpush2.msra.mxu0 0.0
    %192 = vmatprep.mubr.f32.mxu0 0.0
    %193 = vmatmul.mubr.f32.gmra.mxu0 %v127
    %v194 = vpop.f32.mrf.mxu0
    %v195 = vadd.f32 0.0, %v194
    %v196 = vpop.f32.mrf.mxu0
    %197 = vdwg.mxu0
    %v198 = vadd.f32 %v126, %v195
    %199 = vst [vmem:[#allocation2] sm:$0xff] %v198
    // Predicated region
    $region34: #{tpu_custom_call.1} parent=1 // pred_check
      %p200 = pneg %p57
    $region35: #{tpu_custom_call.1} parent=1 // pred_check_branch
      %202 = sbr.rel (%p200) target = $region37
    $region36: #{tpu_custom_call.1} parent=1 // pred_region
      %v203 = vld [vmem:[#allocation2] sm:$0xff]
      %v204 = vld [vmem:[%s3] sm:$0x1]
      %v206 = vlaneseq
      %v207 = vshrl.u32 %v206, 7
      %v208 = vsub.s32 0, %v207
      %v209 = vrot.slane %v204, %v208
      %v211 = vadd.f32 %v203, %v209
      %212 = vst [vmem:[#allocation9] sm:$0xff] %v211
    $region37: #{tpu_custom_call.1} parent=1 // pred_fallthru
      _
    // Predicated region
    $region38: #{tpu_custom_call.1} parent=1 // pred_check
      _
    $region39: #{tpu_custom_call.1} parent=1 // pred_check_branch
      %214 = sbr.rel (0) target = $region41
    $region40: #{tpu_custom_call.1} parent=1 // pred_region
      %s216 = ssub.s32 128, 128
      %217 = vsyncadd [#allocation5], %s216
      %s219 = sshll.u32 [#allocation9], 4
      %s220 = int_to_ptr.vmem [resolvable:$true] %s219
      %222 = dma.vmem_to_hbm [thread:$0]  %s220, 128, %s4, [#allocation5]
    $region41: #{tpu_custom_call.1} parent=1 // pred_fallthru
      _
    // Predicated region
    $region42: #{tpu_custom_call.1} parent=1 // pred_check
      _
    $region43: #{tpu_custom_call.1} parent=1 // pred_check_branch
      %224 = sbr.rel (0) target = $region45
    $region44: #{tpu_custom_call.1} parent=1 // pred_region
      %225 = dma.done [#allocation5], 128
    $region45: #{tpu_custom_call.1} parent=1 // pred_fallthru
      _
    %226 = vsyncpa [#allocation4], 1
    %227 = vsyncpa [#allocation7], 1
    %228 = vsyncpa [#allocation5], 1

</llo_original>
